<compile_context>
chip_gen: v6e
topology: v6e:2x2x1
jax: 0.10.0
libtpu: 0.0.40
codegen_flags: <defaults>
</compile_context>

<pallas_src>
import functools

import jax
import jax.numpy as jnp
import numpy as np
from jax.experimental import pallas as pl
from jax.experimental.pallas import tpu as pltpu


def _round_up(x: int, m: int) -> int:
    return ((x + m - 1) // m) * m


def _wlif_seq_kernel(x_ref, wrec_ref, syn0_ref, mem0_ref, s0_ref,
                     spk_ref, syn_out_ref, mem_out_ref,
                     syn_sc, mem_sc, s_sc,
                     *, alpha: float, beta: float, thr: float):
    """Grid = (batch_tiles, T).  State lives in VMEM scratch across the T axis."""
    t = pl.program_id(1)

    @pl.when(t == 0)
    def _init():
        # Load the initial state for this batch tile into the resident scratch.
        syn_sc[...] = syn0_ref[...]
        mem_sc[...] = mem0_ref[...]
        s_sc[...] = s0_ref[...]

    # Recurrent GEMM: single full-width dot, bf16 operands, f32 accumulation (MXU).
    rec = jnp.dot(s_sc[...], wrec_ref[...], preferred_element_type=jnp.float32)

    # h1 = x @ [I | 0] + S @ W_rec  ==  padded(x) + rec   (identity-pad matmul removed).
    h1 = x_ref[...] + rec
    new_syn = alpha * syn_sc[...] + h1
    new_mem = beta * mem_sc[...] + new_syn
    spike = (new_mem > thr).astype(jnp.float32)          # SurrGradSpike.forward

    spk_ref[...] = spike.astype(spk_ref.dtype)           # per-step spike output
    syn_sc[...] = new_syn                                 # carry state to t+1
    mem_sc[...] = new_mem * (1.0 - spike)                 # membrane reset
    s_sc[...] = spike.astype(s_sc.dtype)                  # next-step S (bf16, exact)

    @pl.when(t == pl.num_programs(1) - 1)
    def _finalize():
        syn_out_ref[...] = syn_sc[...]
        mem_out_ref[...] = mem_sc[...]


def wlif_sequence(x_seq, w_rec, syn0, mem0, s0, *, alpha, beta, thr=1.0):
    """Run T wLIF timesteps in one fused Pallas kernel.

    x_seq:            (T, batch, nb_inputs)
    w_rec:            (D, D), D = nb_inputs + nb_outputs (forward-consistent shape)
    syn0, mem0, s0:   (batch, D) initial state (the module initializes these to zeros)
    Returns (spikes (T, batch, D), final_syn (batch, D), final_mem (batch, D)).
    """
    T, batch, nb_in = x_seq.shape
    D = w_rec.shape[0]
    assert nb_in <= D, "nb_inputs must not exceed D = nb_inputs + nb_outputs"
    f32, bf16 = jnp.float32, jnp.bfloat16

    # ---- layout: lane-dense feature axis, sublane-aligned batch, done ONCE ----
    Dp = _round_up(D, 128)
    batch_p = _round_up(batch, 8)
    tm = batch_p if batch_p <= 256 else 256      # >1 batch tile only for large batch
    batch_p = _round_up(batch_p, tm)

    # x padded to width Dp is exactly h1 = x @ [I | 0]  -- the identity-pad "matmul".
    x_p = jnp.zeros((T, batch_p, Dp), f32).at[:, :batch, :nb_in].set(x_seq.astype(f32))
    w_p = jnp.zeros((Dp, Dp), bf16).at[:D, :D].set(w_rec.astype(bf16))
    syn_p = jnp.zeros((batch_p, Dp), f32).at[:batch, :D].set(syn0.astype(f32))
    mem_p = jnp.zeros((batch_p, Dp), f32).at[:batch, :D].set(mem0.astype(f32))
    s_p = jnp.zeros((batch_p, Dp), bf16).at[:batch, :D].set(s0.astype(bf16))

    grid = (batch_p // tm, T)                    # batch tiles (parallel), time (arbitrary)

    kernel = functools.partial(_wlif_seq_kernel, alpha=float(alpha),
                               beta=float(beta), thr=float(thr))

    # Rough VMEM budget (double-buffered streamed blocks + resident W/state/scratch);
    # kept well under v7x's 64 MiB at these sizes.
    state_b = tm * Dp * 4
    vmem_need = (2 * tm * Dp * 4            # x block (double-buffered)
                 + 2 * tm * Dp * 2          # spike block (double-buffered, bf16)
                 + 2 * Dp * Dp * 2          # W_rec (bf16, conservatively x2)
                 + 6 * state_b              # syn0/mem0/s0 input blocks
                 + 2 * state_b              # final syn/mem output blocks (resident)
                 + 2 * state_b + tm * Dp * 2)  # scratch: syn, mem (f32) + S (bf16)
    vmem_limit = int(min(max(2 * vmem_need, 32 * 1024 * 1024), 64 * 1024 * 1024))

    spk_p, syn_f_p, mem_f_p = pl.pallas_call(
        kernel,
        out_shape=(
            jax.ShapeDtypeStruct((T, batch_p, Dp), bf16),   # per-step spikes (0/1)
            jax.ShapeDtypeStruct((batch_p, Dp), f32),       # final syn
            jax.ShapeDtypeStruct((batch_p, Dp), f32),       # final mem (already reset)
        ),
        grid=grid,
        in_specs=[
            pl.BlockSpec((None, tm, Dp), lambda b, t: (t, b, 0)),  # x_t, streamed per step
            pl.BlockSpec((Dp, Dp), lambda b, t: (0, 0)),           # W_rec, resident (1 DMA)
            pl.BlockSpec((tm, Dp), lambda b, t: (b, 0)),           # syn0 (read at t==0)
            pl.BlockSpec((tm, Dp), lambda b, t: (b, 0)),           # mem0 (read at t==0)
            pl.BlockSpec((tm, Dp), lambda b, t: (b, 0)),           # S0   (read at t==0)
        ],
        out_specs=(
            pl.BlockSpec((None, tm, Dp), lambda b, t: (t, b, 0)),  # spikes per step
            pl.BlockSpec((tm, Dp), lambda b, t: (b, 0)),           # final syn (last t)
            pl.BlockSpec((tm, Dp), lambda b, t: (b, 0)),           # final mem (last t)
        ),
        scratch_shapes=[
            pltpu.VMEM((tm, Dp), f32),    # syn carried across T
            pltpu.VMEM((tm, Dp), f32),    # mem carried across T
            pltpu.VMEM((tm, Dp), bf16),   # S carried across T (MXU-ready dtype)
        ],
        compiler_params=pltpu.CompilerParams(
            dimension_semantics=("parallel", "arbitrary"),
            vmem_limit_bytes=vmem_limit),
    )(x_p, w_p, syn_p, mem_p, s_p)

    # ---- unpad once at the end ----
    spikes = spk_p[:, :batch, :D].astype(f32)
    return spikes, syn_f_p[:batch, :D], mem_f_p[:batch, :D]


def wlif_step(x, w_rec, syn, mem, S, *, alpha, beta, thr=1.0):
    """Single wLIF timestep (== module.forward); thin wrapper over the fused kernel."""
    spikes, new_syn, new_mem = wlif_sequence(
        x[None], w_rec, syn, mem, S, alpha=alpha, beta=beta, thr=thr)
    return spikes[0], new_syn, new_mem


def wlif_reference_teacher_forced(x_seq, w_rec, syn0, mem0, s0, spikes_kernel,
                                  alpha, beta, thr):
    """Pure-JAX reference with the module's exact per-step semantics.

    The recurrent input S and the membrane reset are 'teacher-forced' with the
    kernel's emitted spike train, so a single near-threshold spike flip cannot
    diverge the whole trajectory; each spike decision is still validated against
    thresholding of the reference membrane.  Uses the same bf16 MXU operands as
    the kernel so numerics line up to accumulation-order level.
    """
    T, batch, nb_in = x_seq.shape
    D = w_rec.shape[0]
    w_bf = w_rec.astype(jnp.bfloat16)
    syn, mem, S = syn0, mem0, s0
    mem_pre = []
    for t in range(T):
        h1 = jnp.zeros((batch, D), jnp.float32).at[:, :nb_in].set(x_seq[t])
        h1 = h1 + jnp.dot(S.astype(jnp.bfloat16), w_bf,
                          preferred_element_type=jnp.float32)
        new_syn = alpha * syn + h1
        new_mem = beta * mem + new_syn
        mem_pre.append(new_mem)
        out = spikes_kernel[t].astype(jnp.float32)   # teacher forcing
        syn, mem, S = new_syn, new_mem * (1.0 - out), out
    return jnp.stack(mem_pre), syn, mem


if __name__ == "__main__":
    key = jax.random.PRNGKey(0)
    nb_inputs, nb_outputs = 40, 60
    D = nb_inputs + nb_outputs          # 100 -> padded to 128 inside the wrapper
    batch, T = 12, 8
    alpha, beta, thr = 0.95, 0.9, 1.0

    k1, k2 = jax.random.split(key)
    x_seq = jax.random.normal(k1, (T, batch, nb_inputs), jnp.float32)
    w_rec = (jax.random.normal(k2, (D, D), jnp.float32) / np.sqrt(nb_inputs)
             ).astype(jnp.float32)
    # Module.initialize() starts the state at zeros.
    syn0 = jnp.zeros((batch, D), jnp.float32)
    mem0 = jnp.zeros((batch, D), jnp.float32)
    s0 = jnp.zeros((batch, D), jnp.float32)

    seq_fn = jax.jit(functools.partial(wlif_sequence, alpha=alpha, beta=beta, thr=thr))
    spikes, syn_f, mem_f = seq_fn(x_seq, w_rec, syn0, mem0, s0)
    jax.block_until_ready((spikes, syn_f, mem_f))

    ref_mem_pre, ref_syn, ref_mem = wlif_reference_teacher_forced(
        x_seq, w_rec, syn0, mem0, s0, spikes, alpha, beta, thr)

    spk_np = np.asarray(spikes)
    mem_pre_np = np.asarray(ref_mem_pre)
    ref_spk_np = (mem_pre_np > thr).astype(np.float32)
    # Spike decisions exactly at the threshold are legitimately precision-dependent.
    safe = np.abs(mem_pre_np - thr) > 1e-3

    assert spk_np.shape == (T, batch, D)
    assert spk_np.sum() > 0, "no spikes fired -- degenerate test"
    assert np.array_equal(spk_np[safe], ref_spk_np[safe]), "spike mismatch"
    assert np.allclose(np.asarray(syn_f), np.asarray(ref_syn),
                       rtol=1e-3, atol=1e-3), "final syn mismatch"
    assert np.allclose(np.asarray(mem_f), np.asarray(ref_mem),
                       rtol=1e-3, atol=1e-3), "final mem mismatch"

    print("KERNEL_OK")
</pallas_src>

<mosaic_0001>
module attributes {stable_mosaic.version = 11 : i64} {
  func.func @_wlif_seq_kernel(%arg0: i32, %arg1: i32, %arg2: memref<1x16x128xf32, #tpu.memory_space<vmem>>, %arg3: memref<128x128xbf16, #tpu.memory_space<vmem>>, %arg4: memref<16x128xf32, #tpu.memory_space<vmem>>, %arg5: memref<16x128xf32, #tpu.memory_space<vmem>>, %arg6: memref<16x128xbf16, #tpu.memory_space<vmem>>, %arg7: memref<1x16x128xbf16, #tpu.memory_space<vmem>>, %arg8: memref<16x128xf32, #tpu.memory_space<vmem>>, %arg9: memref<16x128xf32, #tpu.memory_space<vmem>>, %arg10: memref<16x128xf32, #tpu.memory_space<vmem>>, %arg11: memref<16x128xf32, #tpu.memory_space<vmem>>, %arg12: memref<16x128xbf16, #tpu.memory_space<vmem>>) attributes {dimension_semantics = [#tpu.dimension_semantics<parallel>, #tpu.dimension_semantics<arbitrary>], iteration_bounds = array<i64: 1, 8>, scalar_prefetch = 0 : i64, scratch_operands = 3 : i64, tpu.core_type = #tpu.core_type<tc>, window_params = [{transform_indices = @transform_0, window_bounds = array<i64: 1, 16, 128>}, {pipeline_mode = #tpu.pipeline_mode<synchronous>, transform_indices = @transform_1, window_bounds = array<i64: 128, 128>}, {transform_indices = @transform_2, window_bounds = array<i64: 16, 128>}, {transform_indices = @transform_3, window_bounds = array<i64: 16, 128>}, {transform_indices = @transform_4, window_bounds = array<i64: 16, 128>}, {transform_indices = @transform_5, window_bounds = array<i64: 1, 16, 128>}, {transform_indices = @transform_6, window_bounds = array<i64: 16, 128>}, {transform_indices = @transform_7, window_bounds = array<i64: 16, 128>}]} {
    %c0_i32 = arith.constant 0 : i32
    %0 = arith.cmpi eq, %arg1, %c0_i32 : i32
    %1 = arith.extui %0 : i1 to i32
    %c0_i32_0 = arith.constant 0 : i32
    %2 = arith.cmpi ne, %1, %c0_i32_0 : i32
    scf.if %2 {
      %c0_25 = arith.constant 0 : index
      %c0_26 = arith.constant 0 : index
      %35 = vector.load %arg4[%c0_25, %c0_26] : memref<16x128xf32, #tpu.memory_space<vmem>>, vector<16x128xf32>
      %c0_27 = arith.constant 0 : index
      %c0_28 = arith.constant 0 : index
      %36 = vector.load %arg10[%c0_27, %c0_28] : memref<16x128xf32, #tpu.memory_space<vmem>>, vector<16x128xf32>
      tpu.vector_store %arg10[%c0_27, %c0_28], %35 {strides = array<i32>} : memref<16x128xf32, #tpu.memory_space<vmem>>, vector<16x128xf32>,
      %c0_29 = arith.constant 0 : index
      %c0_30 = arith.constant 0 : index
      %37 = vector.load %arg5[%c0_29, %c0_30] : memref<16x128xf32, #tpu.memory_space<vmem>>, vector<16x128xf32>
      %c0_31 = arith.constant 0 : index
      %c0_32 = arith.constant 0 : index
      %38 = vector.load %arg11[%c0_31, %c0_32] : memref<16x128xf32, #tpu.memory_space<vmem>>, vector<16x128xf32>
      tpu.vector_store %arg11[%c0_31, %c0_32], %37 {strides = array<i32>} : memref<16x128xf32, #tpu.memory_space<vmem>>, vector<16x128xf32>,
      %c0_33 = arith.constant 0 : index
      %c0_34 = arith.constant 0 : index
      %39 = vector.load %arg6[%c0_33, %c0_34] : memref<16x128xbf16, #tpu.memory_space<vmem>>, vector<16x128xbf16>
      %c0_35 = arith.constant 0 : index
      %c0_36 = arith.constant 0 : index
      %40 = vector.load %arg12[%c0_35, %c0_36] : memref<16x128xbf16, #tpu.memory_space<vmem>>, vector<16x128xbf16>
      tpu.vector_store %arg12[%c0_35, %c0_36], %39 {strides = array<i32>} : memref<16x128xbf16, #tpu.memory_space<vmem>>, vector<16x128xbf16>,
    } else {
    }
    %c0 = arith.constant 0 : index
    %c0_1 = arith.constant 0 : index
    %3 = vector.load %arg12[%c0, %c0_1] : memref<16x128xbf16, #tpu.memory_space<vmem>>, vector<16x128xbf16>
    %c0_2 = arith.constant 0 : index
    %c0_3 = arith.constant 0 : index
    %4 = vector.load %arg3[%c0_2, %c0_3] : memref<128x128xbf16, #tpu.memory_space<vmem>>, vector<128x128xbf16>
    %cst = arith.constant dense<0.000000e+00> : vector<16x128xf32>
    %5 = tpu.matmul %3, %4, %cst {dimension_numbers = #tpu.dot_dimension_numbers<[1], [0], [0], [1], [0, 0, 1, 1], [], []>} : vector<16x128xbf16>, vector<128x128xbf16>, vector<16x128xf32> -> vector<16x128xf32>
    %c0_4 = arith.constant 0 : index
    %c0_5 = arith.constant 0 : index
    %c0_6 = arith.constant 0 : index
    %6 = vector.load %arg2[%c0_4, %c0_5, %c0_6] : memref<1x16x128xf32, #tpu.memory_space<vmem>>, vector<1x16x128xf32>
    %7 = vector.shape_cast %6 : vector<1x16x128xf32> to vector<16x128xf32>
    %8 = arith.addf %7, %5 : vector<16x128xf32>
    %c0_7 = arith.constant 0 : index
    %c0_8 = arith.constant 0 : index
    %9 = vector.load %arg10[%c0_7, %c0_8] : memref<16x128xf32, #tpu.memory_space<vmem>>, vector<16x128xf32>
    %cst_9 = arith.constant 0.949999988 : f32
    %10 = vector.broadcast %cst_9 : f32 to vector<16x128xf32>
    %11 = arith.mulf %10, %9 : vector<16x128xf32>
    %12 = arith.addf %11, %8 : vector<16x128xf32>
    %c0_10 = arith.constant 0 : index
    %c0_11 = arith.constant 0 : index
    %13 = vector.load %arg11[%c0_10, %c0_11] : memref<16x128xf32, #tpu.memory_space<vmem>>, vector<16x128xf32>
    %cst_12 = arith.constant 0.899999976 : f32
    %14 = vector.broadcast %cst_12 : f32 to vector<16x128xf32>
    %15 = arith.mulf %14, %13 : vector<16x128xf32>
    %16 = arith.addf %15, %12 : vector<16x128xf32>
    %cst_13 = arith.constant 1.000000e+00 : f32
    %17 = vector.broadcast %cst_13 : f32 to vector<16x128xf32>
    %18 = arith.cmpf ogt, %16, %17 : vector<16x128xf32>
    %19 = arith.extui %18 : vector<16x128xi1> to vector<16x128xi32>
    %20 = arith.sitofp %19 : vector<16x128xi32> to vector<16x128xf32>
    %21 = arith.truncf %20 : vector<16x128xf32> to vector<16x128xbf16>
    %c0_14 = arith.constant 0 : index
    %c0_15 = arith.constant 0 : index
    %c0_16 = arith.constant 0 : index
    %22 = vector.load %arg7[%c0_14, %c0_15, %c0_16] : memref<1x16x128xbf16, #tpu.memory_space<vmem>>, vector<1x16x128xbf16>
    %23 = vector.shape_cast %22 : vector<1x16x128xbf16> to vector<16x128xbf16>
    %24 = vector.shape_cast %21 : vector<16x128xbf16> to vector<1x16x128xbf16>
    tpu.vector_store %arg7[%c0_14, %c0_15, %c0_16], %24 {strides = array<i32>} : memref<1x16x128xbf16, #tpu.memory_space<vmem>>, vector<1x16x128xbf16>,
    %c0_17 = arith.constant 0 : index
    %c0_18 = arith.constant 0 : index
    %25 = vector.load %arg10[%c0_17, %c0_18] : memref<16x128xf32, #tpu.memory_space<vmem>>, vector<16x128xf32>
    tpu.vector_store %arg10[%c0_17, %c0_18], %12 {strides = array<i32>} : memref<16x128xf32, #tpu.memory_space<vmem>>, vector<16x128xf32>,
    %cst_19 = arith.constant 1.000000e+00 : f32
    %26 = vector.broadcast %cst_19 : f32 to vector<16x128xf32>
    %27 = arith.subf %26, %20 : vector<16x128xf32>
    %28 = arith.mulf %16, %27 : vector<16x128xf32>
    %c0_20 = arith.constant 0 : index
    %c0_21 = arith.constant 0 : index
    %29 = vector.load %arg11[%c0_20, %c0_21] : memref<16x128xf32, #tpu.memory_space<vmem>>, vector<16x128xf32>
    tpu.vector_store %arg11[%c0_20, %c0_21], %28 {strides = array<i32>} : memref<16x128xf32, #tpu.memory_space<vmem>>, vector<16x128xf32>,
    %30 = arith.truncf %20 : vector<16x128xf32> to vector<16x128xbf16>
    %c0_22 = arith.constant 0 : index
    %c0_23 = arith.constant 0 : index
    %31 = vector.load %arg12[%c0_22, %c0_23] : memref<16x128xbf16, #tpu.memory_space<vmem>>, vector<16x128xbf16>
    tpu.vector_store %arg12[%c0_22, %c0_23], %30 {strides = array<i32>} : memref<16x128xbf16, #tpu.memory_space<vmem>>, vector<16x128xbf16>,
    %c7_i32 = arith.constant 7 : i32
    %32 = arith.cmpi eq, %arg1, %c7_i32 : i32
    %33 = arith.extui %32 : i1 to i32
    %c0_i32_24 = arith.constant 0 : i32
    %34 = arith.cmpi ne, %33, %c0_i32_24 : i32
    scf.if %34 {
      %c0_25 = arith.constant 0 : index
      %c0_26 = arith.constant 0 : index
      %35 = vector.load %arg10[%c0_25, %c0_26] : memref<16x128xf32, #tpu.memory_space<vmem>>, vector<16x128xf32>
      %c0_27 = arith.constant 0 : index
      %c0_28 = arith.constant 0 : index
      %36 = vector.load %arg8[%c0_27, %c0_28] : memref<16x128xf32, #tpu.memory_space<vmem>>, vector<16x128xf32>
      tpu.vector_store %arg8[%c0_27, %c0_28], %35 {strides = array<i32>} : memref<16x128xf32, #tpu.memory_space<vmem>>, vector<16x128xf32>,
      %c0_29 = arith.constant 0 : index
      %c0_30 = arith.constant 0 : index
      %37 = vector.load %arg11[%c0_29, %c0_30] : memref<16x128xf32, #tpu.memory_space<vmem>>, vector<16x128xf32>
      %c0_31 = arith.constant 0 : index
      %c0_32 = arith.constant 0 : index
      %38 = vector.load %arg9[%c0_31, %c0_32] : memref<16x128xf32, #tpu.memory_space<vmem>>, vector<16x128xf32>
      tpu.vector_store %arg9[%c0_31, %c0_32], %37 {strides = array<i32>} : memref<16x128xf32, #tpu.memory_space<vmem>>, vector<16x128xf32>,
    } else {
    }
    return
  }
  func.func @transform_0(%arg0: i32, %arg1: i32) -> (i32, i32, i32) {
    %c0_i32 = arith.constant 0 : i32
    %c0_i32_0 = arith.constant 0 : i32
    return %arg1, %arg0, %c0_i32 : i32, i32, i32
  }
  func.func @transform_1(%arg0: i32, %arg1: i32) -> (i32, i32) {
    %c0_i32 = arith.constant 0 : i32
    %c0_i32_0 = arith.constant 0 : i32
    %c0_i32_1 = arith.constant 0 : i32
    return %c0_i32, %c0_i32_0 : i32, i32
  }
  func.func @transform_2(%arg0: i32, %arg1: i32) -> (i32, i32) {
    %c0_i32 = arith.constant 0 : i32
    %c0_i32_0 = arith.constant 0 : i32
    return %arg0, %c0_i32 : i32, i32
  }
  func.func @transform_3(%arg0: i32, %arg1: i32) -> (i32, i32) {
    %c0_i32 = arith.constant 0 : i32
    %c0_i32_0 = arith.constant 0 : i32
    return %arg0, %c0_i32 : i32, i32
  }
  func.func @transform_4(%arg0: i32, %arg1: i32) -> (i32, i32) {
    %c0_i32 = arith.constant 0 : i32
    %c0_i32_0 = arith.constant 0 : i32
    return %arg0, %c0_i32 : i32, i32
  }
  func.func @transform_5(%arg0: i32, %arg1: i32) -> (i32, i32, i32) {
    %c0_i32 = arith.constant 0 : i32
    %c0_i32_0 = arith.constant 0 : i32
    return %arg1, %arg0, %c0_i32 : i32, i32, i32
  }
  func.func @transform_6(%arg0: i32, %arg1: i32) -> (i32, i32) {
    %c0_i32 = arith.constant 0 : i32
    %c0_i32_0 = arith.constant 0 : i32
    return %arg0, %c0_i32 : i32, i32
  }
  func.func @transform_7(%arg0: i32, %arg1: i32) -> (i32, i32) {
    %c0_i32 = arith.constant 0 : i32
    %c0_i32_0 = arith.constant 0 : i32
    return %arg0, %c0_i32 : i32, i32
  }
}

</mosaic_0001>

<llo_original>
// kernel: wlif_sequence.1
$region0: #{wlif_sequence.1}
  #allocation0 [shape = 'u32[]', space=smem, size = 0x4, offset = 0x4, fixed_abs, tag = 'smem constant byte address 0x4 - core index']
  #allocation1 [shape = 'u32[144,128]{1,0:T(1,128)}', space=vmem, size = 0x12000, scoped, tag = 'internal scratch']
  #allocation2 [shape = 'f32[16,128]{1,0:T(8,128)}', space=vmem, size = 0x2000, scoped, tag = 'scratch operand']
  #allocation3 [shape = 'f32[16,128]{1,0:T(8,128)}', space=vmem, size = 0x2000, scoped, tag = 'scratch operand']
  #allocation4 [shape = 'bf16[16,128]{1,0:T(8,128)(2,1)}', space=vmem, size = 0x1000, scoped, tag = 'scratch operand']
  %s0 = inlined_call_operand.vmem [shape: f32[8,16,128], index: 0, kind: input, shape index: {}]
  %s1 = inlined_call_operand.vmem [shape: bf16[128,128], index: 1, kind: input, shape index: {}]
  %s2 = inlined_call_operand.vmem [shape: f32[16,128], index: 2, kind: input, shape index: {}]
  %s3 = inlined_call_operand.vmem [shape: f32[16,128], index: 3, kind: input, shape index: {}]
  %s4 = inlined_call_operand.vmem [shape: bf16[16,128], index: 4, kind: input, shape index: {}]
  %s5 = inlined_call_operand.vmem [shape: bf16[8,16,128], index: 5, kind: output, shape index: {0}]
  %s6 = inlined_call_operand.hbm [shape: f32[16,128], index: 6, kind: output, shape index: {1}]
  %s7 = inlined_call_operand.hbm [shape: f32[16,128], index: 7, kind: output, shape index: {2}]
  %8 = xla_tuple %s5, %s6, %s7
  %s9 = sld [smem:[#allocation0]]
  $region77: #{wlif_sequence.1} parent=0
    _
  %s11 = ssub.s32 1, %s9
  %s12 = scalar_select 0, %s11, %s9
  $region1: #{wlif_sequence.1} parent=0
    #allocation5 [shape = 'u8[8192]{0}', space=vmem, size = 0x2000, scoped, tag = 'output window, operand 1, single buffered']
    #allocation6 [shape = 's32[2]{0}', space=sflag, size = 0x8, scoped, tag = 'scoped memory for wlif_sequence.1']
    #allocation7 [shape = 'u8[8192]{0}', space=vmem, size = 0x2000, scoped, tag = 'output window, operand 2, single buffered']
    #allocation8 [shape = 's32[1]{0}', space=sflag, size = 0x4, scoped, tag = 'scoped memory for wlif_sequence.1']
    %13 = vsyncpa [#allocation6], 0
    %14 = vsyncpa [#allocation8], 0
    loop: start=0, step=1, limit=10
    $region2: #{wlif_sequence.1} parent=1 // loop_pre_header
      _
    $region3: #{wlif_sequence.1} parent=1 // loop_header
      %s16 = sphi 0, %s20
      %p17 = scmp.ge.s32.totalorder %s16, 10
      %s23 = sphi 0, %s35
      %s24 = sphi 0, %s31
      %s25 = sphi 0, %s23
      %s26 = sphi 0, %s24
      %s27 = sphi 0, %s25
      %s28 = sphi 0, %s26
      %s40 = sphi 0, %s42
      %s43 = sphi 0, %s40
      %s44 = sphi 0, %s43
      %s60 = sphi 0, %s44
      %s64 = sphi 0, %s64
      %s66 = sphi 0, %s64
      %s67 = sphi 0, %s66
      %s81 = sphi 0, %s67
      %s87 = sphi 0, %s89
      %s90 = sphi 0, %s87
      %s91 = sphi 0, %s90
      %s107 = sphi 0, %s91
      %s113 = sphi 0, %s115
      %s116 = sphi 0, %s113
      %s117 = sphi 0, %s116
      %s133 = sphi 0, %s117
      %s139 = sphi 0, %s141
      %s142 = sphi 0, %s139
      %s143 = sphi 0, %s142
      %s159 = sphi 0, %s143
      %s167 = sphi 0, %s169
      %s170 = sphi 0, %s167
      %s171 = sphi 0, %s170
      %s187 = sphi 0, %s171
      %s193 = sphi 0, %s195
      %s196 = sphi 0, %s193
      %s197 = sphi 0, %s196
      %s213 = sphi 0, %s197
      %s219 = sphi 0, %s221
      %s222 = sphi 0, %s219
      %s223 = sphi 0, %s222
      %s239 = sphi 0, %s223
    $region4: #{wlif_sequence.1} parent=1 // loop_header_branch
      %19 = sbr.rel (%p17) target = $region8
    $region5: #{wlif_sequence.1} parent=1 // loop_body
      %s21 = ssub.s32 %s16, 1
      %s22 = ssub.s32 %s16, 2
      %s29 = sadd.s32 1, %s24
      %p30 = scmp.ge.s32.totalorder %s29, 8
      %s31 = scalar_select %p30, 0, %s29
      %s32 = sadd.s32 1, %s23
      %s33 = scalar_select %p30, %s32, %s23
      %p34 = scmp.ge.s32.totalorder %s33, 1
      %s35 = scalar_select %p34, 0, %s33
      %s36 = ssub.s32 %s24, %s31
      %s37 = ssub.s32 %s23, %s35
      %s38 = sor.u32 %s36, %s37
      %p39 = scmp.eq.s32.totalorder %s38, 0
      %s41 = sadd.s32 %s40, 1
      %s42 = scalar_select %p39, %s40, %s41
      %p45 = pneg %p39
      %p46 = scmp.eq.s32.totalorder %s16, 7
      %p47 = por %p45, %p46
      %p48 = scmp.ne.s32.totalorder %s40, %s43
      %p49 = scmp.eq.s32.totalorder %s16, 0
      %p50 = por %p48, %p49
      %p51 = scmp.ne.s32.totalorder %s40, %s43
      %p52 = scmp.eq.s32.totalorder %s21, 7
      %p53 = por %p51, %p52
      %p54 = scmp.ne.s32.totalorder %s43, %s44
      %p55 = scmp.eq.s32.totalorder %s21, 0
      %p56 = por %p54, %p55
      %p57 = scmp.ne.s32.totalorder %s43, %s44
      %p58 = scmp.eq.s32.totalorder %s22, 7
      %p59 = por %p57, %p58
      %p61 = scmp.ne.s32.totalorder %s44, %s60
      %p62 = scmp.eq.s32.totalorder %s22, 0
      %p63 = por %p61, %p62
      %s65 = sadd.s32 %s64, 1
      %p68 = scmp.eq.s32.totalorder %s16, 7
      %p69 = scmp.ne.s32.totalorder %s64, %s66
      %p70 = scmp.eq.s32.totalorder %s16, 0
      %p71 = por %p69, %p70
      %p72 = scmp.ne.s32.totalorder %s64, %s66
      %p73 = scmp.eq.s32.totalorder %s21, 7
      %p74 = por %p72, %p73
      %p75 = scmp.ne.s32.totalorder %s66, %s67
      %p76 = scmp.eq.s32.totalorder %s21, 0
      %p77 = por %p75, %p76
      %p78 = scmp.ne.s32.totalorder %s66, %s67
      %p79 = scmp.eq.s32.totalorder %s22, 7
      %p80 = por %p78, %p79
      %p82 = scmp.ne.s32.totalorder %s67, %s81
      %p83 = scmp.eq.s32.totalorder %s22, 0
      %p84 = por %p82, %p83
      %s85 = ssub.s32 %s23, %s35
      %p86 = scmp.eq.s32.totalorder %s85, 0
      %s88 = sadd.s32 %s87, 1
      %s89 = scalar_select %p86, %s87, %s88
      %p92 = pneg %p86
      %p93 = scmp.eq.s32.totalorder %s16, 7
      %p94 = por %p92, %p93
      %p95 = scmp.ne.s32.totalorder %s87, %s90
      %p96 = scmp.eq.s32.totalorder %s16, 0
      %p97 = por %p95, %p96
      %p98 = scmp.ne.s32.totalorder %s87, %s90
      %p99 = scmp.eq.s32.totalorder %s21, 7
      %p100 = por %p98, %p99
      %p101 = scmp.ne.s32.totalorder %s90, %s91
      %p102 = scmp.eq.s32.totalorder %s21, 0
      %p103 = por %p101, %p102
      %p104 = scmp.ne.s32.totalorder %s90, %s91
      %p105 = scmp.eq.s32.totalorder %s22, 7
      %p106 = por %p104, %p105
      %p108 = scmp.ne.s32.totalorder %s91, %s107
      %p109 = scmp.eq.s32.totalorder %s22, 0
      %p110 = por %p108, %p109
      %s111 = ssub.s32 %s23, %s35
      %p112 = scmp.eq.s32.totalorder %s111, 0
      %s114 = sadd.s32 %s113, 1
      %s115 = scalar_select %p112, %s113, %s114
      %p118 = pneg %p112
      %p119 = scmp.eq.s32.totalorder %s16, 7
      %p120 = por %p118, %p119
      %p121 = scmp.ne.s32.totalorder %s113, %s116
      %p122 = scmp.eq.s32.totalorder %s16, 0
      %p123 = por %p121, %p122
      %p124 = scmp.ne.s32.totalorder %s113, %s116
      %p125 = scmp.eq.s32.totalorder %s21, 7
      %p126 = por %p124, %p125
      %p127 = scmp.ne.s32.totalorder %s116, %s117
      %p128 = scmp.eq.s32.totalorder %s21, 0
      %p129 = por %p127, %p128
      %p130 = scmp.ne.s32.totalorder %s116, %s117
      %p131 = scmp.eq.s32.totalorder %s22, 7
      %p132 = por %p130, %p131
      %p134 = scmp.ne.s32.totalorder %s117, %s133
      %p135 = scmp.eq.s32.totalorder %s22, 0
      %p136 = por %p134, %p135
      %s137 = ssub.s32 %s23, %s35
      %p138 = scmp.eq.s32.totalorder %s137, 0
      %s140 = sadd.s32 %s139, 1
      %s141 = scalar_select %p138, %s139, %s140
      %p144 = pneg %p138
      %p145 = scmp.eq.s32.totalorder %s16, 7
      %p146 = por %p144, %p145
      %p147 = scmp.ne.s32.totalorder %s139, %s142
      %p148 = scmp.eq.s32.totalorder %s16, 0
      %p149 = por %p147, %p148
      %p150 = scmp.ne.s32.totalorder %s139, %s142
      %p151 = scmp.eq.s32.totalorder %s21, 7
      %p152 = por %p150, %p151
      %p153 = scmp.ne.s32.totalorder %s142, %s143
      %p154 = scmp.eq.s32.totalorder %s21, 0
      %p155 = por %p153, %p154
      %p156 = scmp.ne.s32.totalorder %s142, %s143
      %p157 = scmp.eq.s32.totalorder %s22, 7
      %p158 = por %p156, %p157
      %p160 = scmp.ne.s32.totalorder %s143, %s159
      %p161 = scmp.eq.s32.totalorder %s22, 0
      %p162 = por %p160, %p161
      %s163 = ssub.s32 %s24, %s31
      %s164 = ssub.s32 %s23, %s35
      %s165 = sor.u32 %s163, %s164
      %p166 = scmp.eq.s32.totalorder %s165, 0
      %s168 = sadd.s32 %s167, 1
      %s169 = scalar_select %p166, %s167, %s168
      %p172 = pneg %p166
      %p173 = scmp.eq.s32.totalorder %s16, 7
      %p174 = por %p172, %p173
      %p175 = scmp.ne.s32.totalorder %s167, %s170
      %p176 = scmp.eq.s32.totalorder %s16, 0
      %p177 = por %p175, %p176
      %p178 = scmp.ne.s32.totalorder %s167, %s170
      %p179 = scmp.eq.s32.totalorder %s21, 7
      %p180 = por %p178, %p179
      %p181 = scmp.ne.s32.totalorder %s170, %s171
      %p182 = scmp.eq.s32.totalorder %s21, 0
      %p183 = por %p181, %p182
      %p184 = scmp.ne.s32.totalorder %s170, %s171
      %p185 = scmp.eq.s32.totalorder %s22, 7
      %p186 = por %p184, %p185
      %p188 = scmp.ne.s32.totalorder %s171, %s187
      %p189 = scmp.eq.s32.totalorder %s22, 0
      %p190 = por %p188, %p189
      %s191 = ssub.s32 %s23, %s35
      %p192 = scmp.eq.s32.totalorder %s191, 0
      %s194 = sadd.s32 %s193, 1
      %s195 = scalar_select %p192, %s193, %s194
      %p198 = pneg %p192
      %p199 = scmp.eq.s32.totalorder %s16, 7
      %p200 = por %p198, %p199
      %p201 = scmp.ne.s32.totalorder %s193, %s196
      %p202 = scmp.eq.s32.totalorder %s16, 0
      %p203 = por %p201, %p202
      %p204 = scmp.ne.s32.totalorder %s193, %s196
      %p205 = scmp.eq.s32.totalorder %s21, 7
      %p206 = por %p204, %p205
      %p207 = scmp.ne.s32.totalorder %s196, %s197
      %p208 = scmp.eq.s32.totalorder %s21, 0
      %p209 = por %p207, %p208
      %p210 = scmp.ne.s32.totalorder %s196, %s197
      %p211 = scmp.eq.s32.totalorder %s22, 7
      %p212 = por %p210, %p211
      %p214 = scmp.ne.s32.totalorder %s197, %s213
      %p215 = scmp.eq.s32.totalorder %s22, 0
      %p216 = por %p214, %p215
      %s217 = ssub.s32 %s23, %s35
      %p218 = scmp.eq.s32.totalorder %s217, 0
      %s220 = sadd.s32 %s219, 1
      %s221 = scalar_select %p218, %s219, %s220
      %p224 = pneg %p218
      %p225 = scmp.eq.s32.totalorder %s16, 7
      %p226 = por %p224, %p225
      %p227 = scmp.ne.s32.totalorder %s219, %s222
      %p228 = scmp.eq.s32.totalorder %s16, 0
      %p229 = por %p227, %p228
      %p230 = scmp.ne.s32.totalorder %s219, %s222
      %p231 = scmp.eq.s32.totalorder %s21, 7
      %p232 = por %p230, %p231
      %p233 = scmp.ne.s32.totalorder %s222, %s223
      %p234 = scmp.eq.s32.totalorder %s21, 0
      %p235 = por %p233, %p234
      %p236 = scmp.ne.s32.totalorder %s222, %s223
      %p237 = scmp.eq.s32.totalorder %s22, 7
      %p238 = por %p236, %p237
      %p240 = scmp.ne.s32.totalorder %s223, %s239
      %p241 = scmp.eq.s32.totalorder %s22, 0
      %p242 = por %p240, %p241
      %p243 = scmp.le.s32.totalorder 1, %s16
      %p244 = scmp.lt.s32.totalorder %s16, 9
      %p245 = pnand %p243, %p244
      %p246 = pneg %p245
      // Predicated region
      $region9: #{wlif_sequence.1} parent=5 // pred_check
        _
      $region10: #{wlif_sequence.1} parent=5 // pred_check_branch
        %248 = sbr.rel (%p245) target = $region12
      $region11: #{wlif_sequence.1} parent=5 // pred_region
        %s249 = ssub.s32 %s16, 1
        // Predicated region
        $region13: #{wlif_sequence.1} parent=11 // pred_check
          %p250 = pneg %p77
        $region14: #{wlif_sequence.1} parent=11 // pred_check_branch
          %252 = sbr.rel (%p250) target = $region16
        $region15: #{wlif_sequence.1} parent=11 // pred_region
          _
        $region16: #{wlif_sequence.1} parent=11 // pred_fallthru
          _
        // Predicated region
        $region17: #{wlif_sequence.1} parent=11 // pred_check
          %p253 = pneg %p103
        $region18: #{wlif_sequence.1} parent=11 // pred_check_branch
          %255 = sbr.rel (%p253) target = $region20
        $region19: #{wlif_sequence.1} parent=11 // pred_region
          %s256 = smul.u32 2, %s25
          %p257 = scmp.lt.s32.totalorder %s256, 1
          %s258 = scalar_select %p257, %s256, 1
          %s259 = smul.addr %s258, 8
          %s260 = scalar_lea.vmem %s2, %s259
          %s261 = smul.u32 2, %s25
        $region20: #{wlif_sequence.1} parent=11 // pred_fallthru
          _
        // Predicated region
        $region21: #{wlif_sequence.1} parent=11 // pred_check
          %p262 = pneg %p129
        $region22: #{wlif_sequence.1} parent=11 // pred_check_branch
          %264 = sbr.rel (%p262) target = $region24
        $region23: #{wlif_sequence.1} parent=11 // pred_region
          %s265 = smul.u32 2, %s25
          %p266 = scmp.lt.s32.totalorder %s265, 1
          %s267 = scalar_select %p266, %s265, 1
          %s268 = smul.addr %s267, 8
          %s269 = scalar_lea.vmem %s3, %s268
          %s270 = smul.u32 2, %s25
        $region24: #{wlif_sequence.1} parent=11 // pred_fallthru
          _
        // Predicated region
        $region25: #{wlif_sequence.1} parent=11 // pred_check
          %p271 = pneg %p155
        $region26: #{wlif_sequence.1} parent=11 // pred_check_branch
          %273 = sbr.rel (%p271) target = $region28
        $region27: #{wlif_sequence.1} parent=11 // pred_region
          %s274 = smul.u32 2, %s25
          %p275 = scmp.lt.s32.totalorder %s274, 1
          %s276 = scalar_select %p275, %s274, 1
          %s277 = smul.addr %s276, 4
          %s278 = scalar_lea.vmem %s4, %s277
          %s279 = smul.u32 2, %s25
        $region28: #{wlif_sequence.1} parent=11 // pred_fallthru
          _
      $region12: #{wlif_sequence.1} parent=5 // pred_fallthru
        _
      %p280 = scmp.lt.s32.totalorder %s16, 8
      // Predicated region
      $region29: #{wlif_sequence.1} parent=5 // pred_check
        %p281 = pneg %p280
      $region30: #{wlif_sequence.1} parent=5 // pred_check_branch
        %283 = sbr.rel (%p281) target = $region32
      $region31: #{wlif_sequence.1} parent=5 // pred_region
        // Predicated region
        $region33: #{wlif_sequence.1} parent=31 // pred_check
          %p284 = pneg %p50
        $region34: #{wlif_sequence.1} parent=31 // pred_check_branch
          %286 = sbr.rel (%p284) target = $region36
        $region35: #{wlif_sequence.1} parent=31 // pred_region
          %s287 = smul.u32 2, %s23
          %p288 = scmp.lt.s32.totalorder %s24, 7
          %s289 = scalar_select %p288, %s24, 7
          %p290 = scmp.lt.s32.totalorder %s287, 1
          %s291 = scalar_select %p290, %s287, 1
          %s292 = smul.addr %s289, 2
          %s293 = sadd.s32 %s291, %s292
          %s294 = smul.addr %s293, 8
          %s295 = scalar_lea.vmem %s0, %s294
          %s296 = smul.u32 2, %s23
        $region36: #{wlif_sequence.1} parent=31 // pred_fallthru
          _
      $region32: #{wlif_sequence.1} parent=5 // pred_fallthru
        _
      %p297 = scmp.le.s32.totalorder 1, %s16
      %p298 = scmp.lt.s32.totalorder %s16, 9
      %p299 = pnand %p297, %p298
      %p300 = pneg %p299
      // Predicated region
      $region37: #{wlif_sequence.1} parent=5 // pred_check
        _
      $region38: #{wlif_sequence.1} parent=5 // pred_check_branch
        %302 = sbr.rel (%p299) target = $region40
      $region39: #{wlif_sequence.1} parent=5 // pred_region
        %s303 = ssub.s32 %s16, 1
        %s304 = smul.u32 2, %s25
        %p305 = scmp.lt.s32.totalorder %s26, 7
        %s306 = scalar_select %p305, %s26, 7
        %p307 = scmp.lt.s32.totalorder %s304, 1
        %s308 = scalar_select %p307, %s304, 1
        %s309 = smul.addr %s306, 2
        %s310 = sadd.s32 %s308, %s309
        %s311 = smul.addr %s310, 8
        %s312 = scalar_lea.vmem %s0, %s311
        %p313 = pneg %p56
        %p314 = pneg %p53
        %p315 = pneg %p77
        %p316 = pneg %p74
        %s317 = smul.u32 2, %s25
        %p318 = scmp.lt.s32.totalorder %s317, 1
        %s319 = scalar_select %p318, %s317, 1
        %s320 = smul.addr %s319, 8
        %s321 = scalar_lea.vmem %s2, %s320
        %p322 = pneg %p103
        %p323 = pneg %p100
        %s324 = smul.u32 2, %s25
        %p325 = scmp.lt.s32.totalorder %s324, 1
        %s326 = scalar_select %p325, %s324, 1
        %s327 = smul.addr %s326, 8
        %s328 = scalar_lea.vmem %s3, %s327
        %p329 = pneg %p129
        %p330 = pneg %p126
        %s331 = smul.u32 2, %s25
        %p332 = scmp.lt.s32.totalorder %s331, 1
        %s333 = scalar_select %p332, %s331, 1
        %s334 = smul.addr %s333, 4
        %s335 = scalar_lea.vmem %s4, %s334
        %p336 = pneg %p155
        %p337 = pneg %p152
        %p338 = pneg %p183
        %p339 = pneg %p180
        %s340 = smul.u32 2, %s25
        %p341 = scmp.lt.s32.totalorder %s26, 7
        %s342 = scalar_select %p341, %s26, 7
        %p343 = scmp.lt.s32.totalorder %s340, 1
        %s344 = scalar_select %p343, %s340, 1
        %s345 = smul.addr %s342, 2
        %s346 = sadd.s32 %s344, %s345
        %s347 = smul.addr %s346, 4
        %s348 = scalar_lea.vmem %s5, %s347
        %p349 = pneg %p209
        %p350 = pneg %p206
        %p351 = pneg %p235
        %p352 = pneg %p232
        %s353 = smul.u32 2, %s25
        %p354 = scmp.lt.s32.totalorder %s26, 7
        %s355 = scalar_select %p354, %s26, 7
        %p356 = scmp.lt.s32.totalorder %s353, 1
        %s357 = scalar_select %p356, %s353, 1
        %s358 = smul.addr %s355, 2
        %s359 = sadd.s32 %s357, %s358
        %s360 = smul.addr %s359, 8
        %s361 = scalar_lea.vmem %s0, %s360
        %s362 = smul.u32 2, %s25
        %s363 = smul.u32 2, %s25
        %p364 = scmp.lt.s32.totalorder %s363, 1
        %s365 = scalar_select %p364, %s363, 1
        %s366 = smul.addr %s365, 8
        %s367 = scalar_lea.vmem %s2, %s366
        %s368 = smul.u32 2, %s25
        %s369 = smul.u32 2, %s25
        %p370 = scmp.lt.s32.totalorder %s369, 1
        %s371 = scalar_select %p370, %s369, 1
        %s372 = smul.addr %s371, 8
        %s373 = scalar_lea.vmem %s3, %s372
        %s374 = smul.u32 2, %s25
        %s375 = smul.u32 2, %s25
        %p376 = scmp.lt.s32.totalorder %s375, 1
        %s377 = scalar_select %p376, %s375, 1
        %s378 = smul.addr %s377, 4
        %s379 = scalar_lea.vmem %s4, %s378
        %s380 = smul.u32 2, %s25
        %s381 = smul.u32 2, %s25
        %p382 = scmp.lt.s32.totalorder %s26, 7
        %s383 = scalar_select %p382, %s26, 7
        %p384 = scmp.lt.s32.totalorder %s381, 1
        %s385 = scalar_select %p384, %s381, 1
        %s386 = smul.addr %s383, 2
        %s387 = sadd.s32 %s385, %s386
        %s388 = smul.addr %s387, 4
        %s389 = scalar_lea.vmem %s5, %s388
        %s390 = smul.u32 2, %s25
        %s391 = smul.u32 2, %s25
        %s392 = smul.u32 2, %s25
        %p394 = scmp.eq.s32.totalorder %s26, 0
        // Predicated region
        $region41: #{wlif_sequence.1} parent=39 // pred_check
          %p395 = pneg %p394
        $region42: #{wlif_sequence.1} parent=39 // pred_check_branch
          %397 = sbr.rel (%p395) target = $region44
        $region43: #{wlif_sequence.1} parent=39 // pred_region
          %v398 = vld [vmem:[%s367] sm:$0xff]
          %v399 = vld [vmem:[%s367 + $0x8] sm:$0xff]
          %400 = vst [vmem:[#allocation2] sm:$0xff] %v398
          %401 = vst [vmem:[#allocation2 + $0x8] sm:$0xff] %v399
          %v402 = vld [vmem:[%s373] sm:$0xff]
          %v403 = vld [vmem:[%s373 + $0x8] sm:$0xff]
          %404 = vst [vmem:[#allocation3] sm:$0xff] %v402
          %405 = vst [vmem:[#allocation3 + $0x8] sm:$0xff] %v403
          %v406 = vld [vmem:[%s379] sm:$0xf]
          %v407 = vld [vmem:[%s379 + $0x4] sm:$0xf]
          %408 = vst [vmem:[#allocation4] sm:$0xf] %v406
          %409 = vst [vmem:[#allocation4 + $0x4] sm:$0xf] %v407
        $region44: #{wlif_sequence.1} parent=39 // pred_fallthru
          _
        %v410 = vld [vmem:[#allocation4] sm:$0xf]
        %v411 = vld [vmem:[#allocation4 + $0x4] sm:$0xf]
        %v412 = vld [vmem:[%s1] sm:$0xf]
        %v413 = vld [vmem:[%s1 + $0x4] sm:$0xf]
        %v414 = vld [vmem:[%s1 + $0x8] sm:$0xf]
        %v415 = vld [vmem:[%s1 + $0xc] sm:$0xf]
        %v416 = vld [vmem:[%s1 + $0x10] sm:$0xf]
        %v417 = vld [vmem:[%s1 + $0x14] sm:$0xf]
        %v418 = vld [vmem:[%s1 + $0x18] sm:$0xf]
        %v419 = vld [vmem:[%s1 + $0x1c] sm:$0xf]
        %v420 = vld [vmem:[%s1 + $0x20] sm:$0xf]
        %v421 = vld [vmem:[%s1 + $0x24] sm:$0xf]
        %v422 = vld [vmem:[%s1 + $0x28] sm:$0xf]
        %v423 = vld [vmem:[%s1 + $0x2c] sm:$0xf]
        %v424 = vld [vmem:[%s1 + $0x30] sm:$0xf]
        %v425 = vld [vmem:[%s1 + $0x34] sm:$0xf]
        %v426 = vld [vmem:[%s1 + $0x38] sm:$0xf]
        %v427 = vld [vmem:[%s1 + $0x3c] sm:$0xf]
        %v430 = vunpack.c.l.b16 %v410
        %v431 = vunpack.c.l.b16 %v411
        %v432 = vpack.c.b16 %v431, %v430
        %v450 = vunpack.c.l.b16 %v412
        %v451 = vunpack.c.l.b16 %v413
        %v452 = vunpack.c.l.b16 %v414
        %v453 = vunpack.c.l.b16 %v415
        %v454 = vunpack.c.l.b16 %v416
        %v455 = vunpack.c.l.b16 %v417
        %v456 = vunpack.c.l.b16 %v418
        %v457 = vunpack.c.l.b16 %v419
        %v458 = vunpack.c.l.b16 %v420
        %v459 = vunpack.c.l.b16 %v421
        %v460 = vunpack.c.l.b16 %v422
        %v461 = vunpack.c.l.b16 %v423
        %v462 = vunpack.c.l.b16 %v424
        %v463 = vunpack.c.l.b16 %v425
        %v464 = vunpack.c.l.b16 %v426
        %v465 = vunpack.c.l.b16 %v427
        %v466 = vpack.c.b16 %v451, %v450
        %v467 = vpack.c.b16 %v453, %v452
        %v468 = vpack.c.b16 %v455, %v454
        %v469 = vpack.c.b16 %v457, %v456
        %v470 = vpack.c.b16 %v459, %v458
        %v471 = vpack.c.b16 %v461, %v460
        %v472 = vpack.c.b16 %v463, %v462
        %v473 = vpack.c.b16 %v465, %v464
        %482 = vmatprep.subr.bf16.mxu0 0
        %483 = vmatpush1.bf16.msra.mxu0 %v473
        %484 = vmatprep.subr.bf16.mxu0 0
        %485 = vmatpush1.bf16.msra.mxu0 %v472
        %486 = vmatprep.subr.bf16.mxu0 0
        %487 = vmatpush1.bf16.msra.mxu0 %v471
        %488 = vmatprep.subr.bf16.mxu0 0
        %489 = vmatpush1.bf16.msra.mxu0 %v470
        %490 = vmatprep.subr.bf16.mxu0 0
        %491 = vmatpush1.bf16.msra.mxu0 %v469
        %492 = vmatprep.subr.bf16.mxu0 0
        %493 = vmatpush1.bf16.msra.mxu0 %v468
        %494 = vmatprep.subr.bf16.mxu0 0
        %495 = vmatpush1.bf16.msra.mxu0 %v467
        %496 = vmatprep.subr.bf16.mxu0 0
        %497 = vmatpush1.bf16.msra.mxu0 %v466
        %498 = vmatprep.subr.bf16.mxu0 0
        %499 = vmatpush2.bf16.msra.mxu0 0
        %500 = vmatprep.subr.bf16.mxu0 0
        %501 = vmatpush2.bf16.msra.mxu0 0
        %502 = vmatprep.subr.bf16.mxu0 0
        %503 = vmatpush2.bf16.msra.mxu0 0
        %504 = vmatprep.subr.bf16.mxu0 0
        %505 = vmatpush2.bf16.msra.mxu0 0
        %506 = vmatprep.subr.bf16.mxu0 0
        %507 = vmatpush2.bf16.msra.mxu0 0
        %508 = vmatprep.subr.bf16.mxu0 0
        %509 = vmatpush2.bf16.msra.mxu0 0
        %510 = vmatprep.subr.bf16.mxu0 0
        %511 = vmatpush2.bf16.msra.mxu0 0
        %512 = vmatprep.subr.bf16.mxu0 0
        %513 = vmatpush2.bf16.msra.mxu0 0
        %514 = vmatprep.mubr.bf16.mxu0 0
        %515 = vmatmul.mubr.bf16.gmra.mxu0 %v432
        %v516 = vpop.f32.mrf.mxu0
        %v517 = vadd.f32 0.0, %v516
        %v518 = vpop.f32.mrf.mxu0
        %v519 = vpop.f32.mrf.mxu0
        %v520 = vadd.f32 0.0, %v519
        %v521 = vpop.f32.mrf.mxu0
        %522 = vdwg.mxu0
        %v523 = vld [vmem:[%s361] sm:$0xff]
        %v524 = vld [vmem:[%s361 + $0x8] sm:$0xff]
        %v525 = vadd.f32 %v523, %v517
        %v526 = vadd.f32 %v524, %v520
        %v527 = vld [vmem:[#allocation2] sm:$0xff]
        %v528 = vld [vmem:[#allocation2 + $0x8] sm:$0xff]
        %v529 = vmul.f32 %v527, 0.95
        %v530 = vmul.f32 %v528, 0.95
        %v531 = vadd.f32 %v529, %v525
        %v532 = vadd.f32 %v530, %v526
        %v533 = vld [vmem:[#allocation3] sm:$0xff]
        %v534 = vld [vmem:[#allocation3 + $0x8] sm:$0xff]
        %v535 = vmul.f32 %v533, 0.9
        %v536 = vmul.f32 %v534, 0.9
        %v537 = vadd.f32 %v535, %v531
        %v538 = vadd.f32 %v536, %v532
        %vm539 = vcmp.gt.f32.partialorder %v537, 1.0
        %vm540 = vcmp.gt.f32.partialorder %v538, 1.0
        %v541 = vsel %vm539, 1, 0
        %v542 = vsel %vm540, 1, 0
        %v543 = vcvt.s32.f32 %v541
        %v544 = vcvt.s32.f32 %v542
        %v545 = vpack.c.bf16 %v544, %v543
        %v547 = vunpack.c.l.b16 %v545
        %v548 = vunpack.c.h.b16 %v545
        %v549 = vpack.c.b16 %v547, %v547
        %v550 = vpack.c.b16 %v548, %v548
        %553 = vst [vmem:[%s389] sm:$0xf] %v549
        %554 = vst [vmem:[%s389 + $0x4] sm:$0xf] %v550
        %555 = vst [vmem:[#allocation2] sm:$0xff] %v531
        %556 = vst [vmem:[#allocation2 + $0x8] sm:$0xff] %v532
        %v557 = vsub.f32 1.0, %v543
        %v558 = vsub.f32 1.0, %v544
        %v559 = vmul.f32 %v537, %v557
        %v560 = vmul.f32 %v538, %v558
        %561 = vst [vmem:[#allocation3] sm:$0xff] %v559
        %562 = vst [vmem:[#allocation3 + $0x8] sm:$0xff] %v560
        %563 = vst [vmem:[#allocation4] sm:$0xf] %v549
        %564 = vst [vmem:[#allocation4 + $0x4] sm:$0xf] %v550
        %p565 = scmp.eq.s32.totalorder %s26, 7
        // Predicated region
        $region45: #{wlif_sequence.1} parent=39 // pred_check
          %p566 = pneg %p565
        $region46: #{wlif_sequence.1} parent=39 // pred_check_branch
          %568 = sbr.rel (%p566) target = $region48
        $region47: #{wlif_sequence.1} parent=39 // pred_region
          %v569 = vld [vmem:[#allocation2] sm:$0xff]
          %v570 = vld [vmem:[#allocation2 + $0x8] sm:$0xff]
          %571 = vst [vmem:[#allocation5] sm:$0xff] %v569
          %572 = vst [vmem:[#allocation5 + $0x8] sm:$0xff] %v570
          %v573 = vld [vmem:[#allocation3] sm:$0xff]
          %v574 = vld [vmem:[#allocation3 + $0x8] sm:$0xff]
          %575 = vst [vmem:[#allocation7] sm:$0xff] %v573
          %576 = vst [vmem:[#allocation7 + $0x8] sm:$0xff] %v574
        $region48: #{wlif_sequence.1} parent=39 // pred_fallthru
          _
        %s577 = smul.u32 2, %s25
        %p578 = scmp.lt.s32.totalorder %s26, 7
        %s579 = scalar_select %p578, %s26, 7
        %p580 = scmp.lt.s32.totalorder %s577, 1
        %s581 = scalar_select %p580, %s577, 1
        %s582 = smul.addr %s579, 2
        %s583 = sadd.s32 %s581, %s582
        %s584 = smul.addr %s583, 4
        %s585 = scalar_lea.vmem %s5, %s584
        // Predicated region
        $region49: #{wlif_sequence.1} parent=39 // pred_check
          %p586 = pneg %p180
        $region50: #{wlif_sequence.1} parent=39 // pred_check_branch
          %588 = sbr.rel (%p586) target = $region52
        $region51: #{wlif_sequence.1} parent=39 // pred_region
          %s589 = smul.u32 2, %s25
        $region52: #{wlif_sequence.1} parent=39 // pred_fallthru
          _
        // Predicated region
        $region53: #{wlif_sequence.1} parent=39 // pred_check
          %p590 = pneg %p206
        $region54: #{wlif_sequence.1} parent=39 // pred_check_branch
          %592 = sbr.rel (%p590) target = $region56
        $region55: #{wlif_sequence.1} parent=39 // pred_region
          %s593 = smul.u32 2, %s25
          %s595 = ssub.s32 256, 256
          %596 = vsyncadd [#allocation6], %s595
          %s597 = smul.addr %s593, 128
          %s598 = scalar_lea.hbm %s6, %s597
          %s599 = sshll.u32 [#allocation5], 4
          %s600 = int_to_ptr.vmem [resolvable:$true] %s599
          %605 = dma.vmem_to_hbm [thread:$0]  %s600, 256, %s598, [#allocation6], 128, 128, 8
        $region56: #{wlif_sequence.1} parent=39 // pred_fallthru
          _
        // Predicated region
        $region57: #{wlif_sequence.1} parent=39 // pred_check
          %p606 = pneg %p232
        $region58: #{wlif_sequence.1} parent=39 // pred_check_branch
          %608 = sbr.rel (%p606) target = $region60
        $region59: #{wlif_sequence.1} parent=39 // pred_region
          %s609 = smul.u32 2, %s25
          %s611 = ssub.s32 256, 256
          %612 = vsyncadd [#allocation8], %s611
          %s613 = smul.addr %s609, 128
          %s614 = scalar_lea.hbm %s7, %s613
          %s615 = sshll.u32 [#allocation7], 4
          %s616 = int_to_ptr.vmem [resolvable:$true] %s615
          %621 = dma.vmem_to_hbm [thread:$0]  %s616, 256, %s614, [#allocation8], 128, 128, 8
        $region60: #{wlif_sequence.1} parent=39 // pred_fallthru
          _
        // Predicated region
        $region61: #{wlif_sequence.1} parent=39 // pred_check
          %p622 = pneg %p206
        $region62: #{wlif_sequence.1} parent=39 // pred_check_branch
          %624 = sbr.rel (%p622) target = $region64
        $region63: #{wlif_sequence.1} parent=39 // pred_region
          %625 = dma.done [#allocation6], 256
        $region64: #{wlif_sequence.1} parent=39 // pred_fallthru
          _
        // Predicated region
        $region65: #{wlif_sequence.1} parent=39 // pred_check
          %p626 = pneg %p232
        $region66: #{wlif_sequence.1} parent=39 // pred_check_branch
          %628 = sbr.rel (%p626) target = $region68
        $region67: #{wlif_sequence.1} parent=39 // pred_region
          %629 = dma.done [#allocation8], 256
        $region68: #{wlif_sequence.1} parent=39 // pred_fallthru
          _
      $region40: #{wlif_sequence.1} parent=5 // pred_fallthru
        _
      %p630 = scmp.le.s32.totalorder 2, %s16
      // Predicated region
      $region69: #{wlif_sequence.1} parent=5 // pred_check
        %p631 = pneg %p630
      $region70: #{wlif_sequence.1} parent=5 // pred_check_branch
        %633 = sbr.rel (%p631) target = $region72
      $region71: #{wlif_sequence.1} parent=5 // pred_region
        %s634 = ssub.s32 %s16, 2
        // Predicated region
        $region73: #{wlif_sequence.1} parent=71 // pred_check
          %p635 = pneg %p186
        $region74: #{wlif_sequence.1} parent=71 // pred_check_branch
          %637 = sbr.rel (%p635) target = $region76
        $region75: #{wlif_sequence.1} parent=71 // pred_region
          %s638 = smul.u32 2, %s27
          %p639 = scmp.lt.s32.totalorder %s28, 7
          %s640 = scalar_select %p639, %s28, 7
          %p641 = scmp.lt.s32.totalorder %s638, 1
          %s642 = scalar_select %p641, %s638, 1
          %s643 = smul.addr %s640, 2
          %s644 = sadd.s32 %s642, %s643
          %s645 = smul.addr %s644, 4
          %s646 = scalar_lea.vmem %s5, %s645
        $region76: #{wlif_sequence.1} parent=71 // pred_fallthru
          _
      $region72: #{wlif_sequence.1} parent=5 // pred_fallthru
        _
    $region6: #{wlif_sequence.1} parent=1 // loop_footer
      %s20 = sadd.s32 1, %s16
    $region7: #{wlif_sequence.1} parent=1 // loop_footer_branch
      %15 = sbr.rel target = $region3
    $region8: #{wlif_sequence.1} parent=1 // loop_exit
      _
    %647 = vsyncpa [#allocation6], 1
    %s648 = scalar_lea.sflag [#allocation6], 1
    %649 = vsyncpa %s648, 1
    %650 = vsyncpa [#allocation8], 1

</llo_original>
